<compile_context>
chip_gen: v5e
topology: v5e:2x2
jax: 0.10.0
libtpu: 0.0.40
codegen_flags: <defaults>
</compile_context>

<pallas_src>
import functools

import jax
import jax.numpy as jnp
from jax import lax
from jax.experimental import pallas as pl
from jax.experimental.pallas import tpu as pltpu

LANE = 128


def _pool_kernel(x_ref, o_ref, sum_acc, max_acc, *, hw_logical, t_hw, masked):
    # x_ref  : (Nb, C, T_HW)  one tile of the flattened input
    # o_ref  : (2, Nb, C)     [0] = mean over HW, [1] = max over HW (lane-dense)
    # sum_acc: (Nb, C, LANE)  f32 running partial sums   (VMEM scratch)
    # max_acc: (Nb, C, LANE)  f32 running partial maxima (VMEM scratch)
    hw_idx = pl.program_id(1)

    @pl.when(hw_idx == 0)
    def _():
        sum_acc[...] = jnp.zeros_like(sum_acc)
        max_acc[...] = jnp.full_like(max_acc, -jnp.inf)

    base = hw_idx * t_hw
    n_chunks = t_hw // LANE

    def load(k):
        start = k * LANE                                   # static, lane-aligned
        c = x_ref[:, :, start:start + LANE].astype(jnp.float32)  # (Nb, C, LANE)
        if masked:
            pos = base + start + lax.broadcasted_iota(jnp.int32, c.shape, 2)
            cm = jnp.where(pos < hw_logical, c, -jnp.inf)  # mask padded tail for max
        else:
            cm = c
        return c, cm

    # Partial reduction over this tile's chunks, folded into scratch once per
    # grid step (single accumulator read-modify-write per step).
    s_loc, m_loc = load(0)
    for k in range(1, n_chunks):                           # short static unroll
        c, cm = load(k)
        s_loc = s_loc + c                                  # zero padding -> safe
        m_loc = jnp.maximum(m_loc, cm)

    sum_acc[...] += s_loc
    max_acc[...] = jnp.maximum(max_acc[...], m_loc)

    @pl.when(hw_idx == pl.num_programs(1) - 1)
    def _():
        mean = jnp.sum(sum_acc[...], axis=-1) * (1.0 / hw_logical)   # (Nb, C)
        mx = jnp.max(max_acc[...], axis=-1)                          # (Nb, C)
        o_ref[0] = mean.astype(o_ref.dtype)
        o_ref[1] = mx.astype(o_ref.dtype)


def channel_attention(x, w1, w2, *, t_hw_target=512, nb_max=8):
    """x: (N, C, H, W) NCHW.  w1: (C//16, C), w2: (C, C//16).  Returns (N, C, 1, 1)."""
    N, C, H, W = x.shape
    HW = H * W

    # ---- tiling of the spatial (reduction) axis ----
    hw_pad128 = -(-HW // LANE) * LANE
    t_hw = min(hw_pad128, t_hw_target)          # multiple of 128, VMEM-bounded
    hw_pad = -(-hw_pad128 // t_hw) * t_hw

    # ---- batch packing (amortize per-step overhead for small images) ----
    if N <= nb_max:
        nb, n_pad = N, N
    else:
        nb = nb_max
        n_pad = -(-N // nb) * nb

    x_flat = x.reshape(N, C, HW)
    if (n_pad != N) or (hw_pad != HW):
        x_flat = jnp.pad(x_flat, ((0, n_pad - N), (0, 0), (0, hw_pad - HW)))

    grid = (n_pad // nb, hw_pad // t_hw)
    kernel = functools.partial(
        _pool_kernel, hw_logical=HW, t_hw=t_hw, masked=(hw_pad != HW))

    pooled = pl.pallas_call(
        kernel,
        out_shape=jax.ShapeDtypeStruct((2, n_pad, C), jnp.float32),
        grid_spec=pltpu.PrefetchScalarGridSpec(
            num_scalar_prefetch=0,
            grid=grid,
            in_specs=[pl.BlockSpec((nb, C, t_hw), lambda n, h: (n, 0, h))],
            out_specs=pl.BlockSpec((2, nb, C), lambda n, h: (0, n, 0)),
            scratch_shapes=[pltpu.VMEM((nb, C, LANE), jnp.float32),
                            pltpu.VMEM((nb, C, LANE), jnp.float32)],
        ),
        compiler_params=pltpu.CompilerParams(
            dimension_semantics=("parallel", "arbitrary")),
    )(x_flat)

    avg = pooled[0, :N]                                    # (N, C)
    mx = pooled[1, :N]                                     # (N, C)

    # Tiny shared MLP (fc1 -> relu -> fc2) + sigmoid: plain XLA on (N, C).
    w1f = w1.astype(jnp.float32)
    w2f = w2.astype(jnp.float32)

    def mlp(p):
        h = jnp.maximum(p @ w1f.T, 0.0)                    # (N, C//16)
        return h @ w2f.T                                   # (N, C)

    out = jax.nn.sigmoid(mlp(avg) + mlp(mx)).astype(x.dtype)
    return out[:, :, None, None]                           # (N, C, 1, 1)


def reference(x, w1, w2):
    # Pure-JAX reference mirroring the PyTorch forward.
    avg = jnp.mean(x, axis=(2, 3))                         # (N, C)
    mx = jnp.max(x, axis=(2, 3))                           # (N, C)

    def mlp(p):
        h = jnp.maximum(p @ w1.T, 0.0)
        return h @ w2.T

    return jax.nn.sigmoid(mlp(avg) + mlp(mx))[:, :, None, None]


if __name__ == "__main__":
    key = jax.random.PRNGKey(0)

    # Case 1: TPU-friendly shape (HW multiple of 128, unmasked fast path).
    N, C, H, W = 2, 128, 16, 16
    Ch = C // 16
    kx, k1, k2, key = jax.random.split(key, 4)
    x = jax.random.normal(kx, (N, C, H, W), dtype=jnp.float32)
    w1 = jax.random.normal(k1, (Ch, C), dtype=jnp.float32) * (2.0 / C) ** 0.5
    w2 = jax.random.normal(k2, (C, Ch), dtype=jnp.float32) * (2.0 / Ch) ** 0.5

    out = jax.block_until_ready(channel_attention(x, w1, w2))
    ref = reference(x, w1, w2)
    assert out.shape == (N, C, 1, 1)
    assert jnp.allclose(out, ref, atol=1e-5, rtol=1e-5)

    # Case 2: ragged spatial size (exercises the masked tail + mean/HW path).
    N2, C2, H2, W2 = 3, 64, 9, 9
    Ch2 = C2 // 16
    kx2, k12, k22, key = jax.random.split(key, 4)
    x2 = jax.random.normal(kx2, (N2, C2, H2, W2), dtype=jnp.float32)
    w12 = jax.random.normal(k12, (Ch2, C2), dtype=jnp.float32) * (2.0 / C2) ** 0.5
    w22 = jax.random.normal(k22, (C2, Ch2), dtype=jnp.float32) * (2.0 / Ch2) ** 0.5

    out2 = jax.block_until_ready(channel_attention(x2, w12, w22))
    ref2 = reference(x2, w12, w22)
    assert out2.shape == (N2, C2, 1, 1)
    assert jnp.allclose(out2, ref2, atol=1e-5, rtol=1e-5)

    print("KERNEL_OK")
</pallas_src>

<mosaic_0001>
module attributes {stable_mosaic.version = 11 : i64} {
  func.func @_pool_kernel(%arg0: i32, %arg1: i32, %arg2: memref<2x128x256xf32, #tpu.memory_space<vmem>>, %arg3: memref<2x2x128xf32, #tpu.memory_space<vmem>>, %arg4: memref<2x128x128xf32, #tpu.memory_space<vmem>>, %arg5: memref<2x128x128xf32, #tpu.memory_space<vmem>>) attributes {dimension_semantics = [#tpu.dimension_semantics<parallel>, #tpu.dimension_semantics<arbitrary>], iteration_bounds = array<i64: 1, 1>, scalar_prefetch = 0 : i64, scratch_operands = 2 : i64, tpu.core_type = #tpu.core_type<tc>, window_params = [{transform_indices = @transform_0, window_bounds = array<i64: 2, 128, 256>}, {transform_indices = @transform_1, window_bounds = array<i64: 2, 2, 128>}]} {
    %c0_i32 = arith.constant 0 : i32
    %0 = arith.cmpi eq, %arg1, %c0_i32 : i32
    %1 = arith.extui %0 : i1 to i32
    %c0_i32_0 = arith.constant 0 : i32
    %2 = arith.cmpi ne, %1, %c0_i32_0 : i32
    scf.if %2 {
      %cst = arith.constant 0.000000e+00 : f32
      %16 = vector.broadcast %cst : f32 to vector<2x128x128xf32>
      %c0_19 = arith.constant 0 : index
      %c0_20 = arith.constant 0 : index
      %c0_21 = arith.constant 0 : index
      %17 = vector.load %arg4[%c0_19, %c0_20, %c0_21] : memref<2x128x128xf32, #tpu.memory_space<vmem>>, vector<2x128x128xf32>
      tpu.vector_store %arg4[%c0_19, %c0_20, %c0_21], %16 {strides = array<i32>} : memref<2x128x128xf32, #tpu.memory_space<vmem>>, vector<2x128x128xf32>,
      %cst_22 = arith.constant 0xFF800000 : f32
      %18 = vector.broadcast %cst_22 : f32 to vector<2x128x128xf32>
      %c0_23 = arith.constant 0 : index
      %c0_24 = arith.constant 0 : index
      %c0_25 = arith.constant 0 : index
      %19 = vector.load %arg5[%c0_23, %c0_24, %c0_25] : memref<2x128x128xf32, #tpu.memory_space<vmem>>, vector<2x128x128xf32>
      tpu.vector_store %arg5[%c0_23, %c0_24, %c0_25], %18 {strides = array<i32>} : memref<2x128x128xf32, #tpu.memory_space<vmem>>, vector<2x128x128xf32>,
    } else {
    }
    %c0 = arith.constant 0 : index
    %c0_1 = arith.constant 0 : index
    %c0_2 = arith.constant 0 : index
    %3 = vector.load %arg2[%c0, %c0_1, %c0_2] : memref<2x128x256xf32, #tpu.memory_space<vmem>>, vector<2x128x128xf32>
    %c0_3 = arith.constant 0 : index
    %c0_4 = arith.constant 0 : index
    %c128 = arith.constant 128 : index
    %4 = vector.load %arg2[%c0_3, %c0_4, %c128] : memref<2x128x256xf32, #tpu.memory_space<vmem>>, vector<2x128x128xf32>
    %5 = arith.addf %3, %4 : vector<2x128x128xf32>
    %6 = arith.maximumf %3, %4 : vector<2x128x128xf32>
    %c0_5 = arith.constant 0 : index
    %c0_6 = arith.constant 0 : index
    %c0_7 = arith.constant 0 : index
    %7 = vector.load %arg4[%c0_5, %c0_6, %c0_7] : memref<2x128x128xf32, #tpu.memory_space<vmem>>, vector<2x128x128xf32>
    %8 = arith.addf %7, %5 : vector<2x128x128xf32>
    %c0_8 = arith.constant 0 : index
    %c0_9 = arith.constant 0 : index
    %c0_10 = arith.constant 0 : index
    %9 = vector.load %arg4[%c0_8, %c0_9, %c0_10] : memref<2x128x128xf32, #tpu.memory_space<vmem>>, vector<2x128x128xf32>
    tpu.vector_store %arg4[%c0_8, %c0_9, %c0_10], %8 {strides = array<i32>} : memref<2x128x128xf32, #tpu.memory_space<vmem>>, vector<2x128x128xf32>,
    %c0_11 = arith.constant 0 : index
    %c0_12 = arith.constant 0 : index
    %c0_13 = arith.constant 0 : index
    %10 = vector.load %arg5[%c0_11, %c0_12, %c0_13] : memref<2x128x128xf32, #tpu.memory_space<vmem>>, vector<2x128x128xf32>
    %11 = arith.maximumf %10, %6 : vector<2x128x128xf32>
    %c0_14 = arith.constant 0 : index
    %c0_15 = arith.constant 0 : index
    %c0_16 = arith.constant 0 : index
    %12 = vector.load %arg5[%c0_14, %c0_15, %c0_16] : memref<2x128x128xf32, #tpu.memory_space<vmem>>, vector<2x128x128xf32>
    tpu.vector_store %arg5[%c0_14, %c0_15, %c0_16], %11 {strides = array<i32>} : memref<2x128x128xf32, #tpu.memory_space<vmem>>, vector<2x128x128xf32>,
    %c0_i32_17 = arith.constant 0 : i32
    %13 = arith.cmpi eq, %arg1, %c0_i32_17 : i32
    %14 = arith.extui %13 : i1 to i32
    %c0_i32_18 = arith.constant 0 : i32
    %15 = arith.cmpi ne, %14, %c0_i32_18 : i32
    scf.if %15 {
      %c0_19 = arith.constant 0 : index
      %c0_20 = arith.constant 0 : index
      %c0_21 = arith.constant 0 : index
      %16 = vector.load %arg4[%c0_19, %c0_20, %c0_21] : memref<2x128x128xf32, #tpu.memory_space<vmem>>, vector<2x128x128xf32>
      %cst = arith.constant dense<0.000000e+00> : vector<2x128xf32>
      %17 = vector.multi_reduction <add>, %16, %cst [2] : vector<2x128x128xf32> to vector<2x128xf32>
      %cst_22 = arith.constant 3.906250e-03 : f32
      %18 = vector.broadcast %cst_22 : f32 to vector<2x128xf32>
      %19 = arith.mulf %17, %18 : vector<2x128xf32>
      %c0_23 = arith.constant 0 : index
      %c0_24 = arith.constant 0 : index
      %c0_25 = arith.constant 0 : index
      %20 = vector.load %arg5[%c0_23, %c0_24, %c0_25] : memref<2x128x128xf32, #tpu.memory_space<vmem>>, vector<2x128x128xf32>
      %cst_26 = arith.constant dense<0xFF800000> : vector<2x128xf32>
      %21 = vector.multi_reduction <maximumf>, %20, %cst_26 [2] : vector<2x128x128xf32> to vector<2x128xf32>
      %c0_27 = arith.constant 0 : index
      %c0_28 = arith.constant 0 : index
      %c0_29 = arith.constant 0 : index
      %22 = vector.load %arg3[%c0_27, %c0_28, %c0_29] : memref<2x2x128xf32, #tpu.memory_space<vmem>>, vector<1x2x128xf32>
      %23 = vector.shape_cast %22 : vector<1x2x128xf32> to vector<2x128xf32>
      %24 = vector.shape_cast %19 : vector<2x128xf32> to vector<1x2x128xf32>
      tpu.vector_store %arg3[%c0_27, %c0_28, %c0_29], %24 {strides = array<i32>} : memref<2x2x128xf32, #tpu.memory_space<vmem>>, vector<1x2x128xf32>,
      %c1 = arith.constant 1 : index
      %c0_30 = arith.constant 0 : index
      %c0_31 = arith.constant 0 : index
      %25 = vector.load %arg3[%c1, %c0_30, %c0_31] : memref<2x2x128xf32, #tpu.memory_space<vmem>>, vector<1x2x128xf32>
      %26 = vector.shape_cast %25 : vector<1x2x128xf32> to vector<2x128xf32>
      %27 = vector.shape_cast %21 : vector<2x128xf32> to vector<1x2x128xf32>
      tpu.vector_store %arg3[%c1, %c0_30, %c0_31], %27 {strides = array<i32>} : memref<2x2x128xf32, #tpu.memory_space<vmem>>, vector<1x2x128xf32>,
    } else {
    }
    return
  }
  func.func @transform_0(%arg0: i32, %arg1: i32) -> (i32, i32, i32) {
    %c0_i32 = arith.constant 0 : i32
    %c0_i32_0 = arith.constant 0 : i32
    return %arg0, %c0_i32, %arg1 : i32, i32, i32
  }
  func.func @transform_1(%arg0: i32, %arg1: i32) -> (i32, i32, i32) {
    %c0_i32 = arith.constant 0 : i32
    %c0_i32_0 = arith.constant 0 : i32
    %c0_i32_1 = arith.constant 0 : i32
    return %c0_i32, %arg0, %c0_i32_0 : i32, i32, i32
  }
}

</mosaic_0001>

<llo_original>
// kernel: tpu_custom_call.1
$region0: #{tpu_custom_call.1}
  #allocation0 [shape = 'u32[]', space=smem, size = 0x4, offset = 0x4, fixed_abs, tag = 'smem constant byte address 0x4 - core index']
  #allocation1 [shape = 'u32[72,128]{1,0:T(1,128)}', space=vmem, size = 0x9000, scoped, tag = 'internal scratch']
  #allocation2 [shape = 'f32[2,128,128]{2,1,0:T(8,128)}', space=vmem, size = 0x20000, scoped, tag = 'scratch operand']
  #allocation3 [shape = 'f32[2,128,128]{2,1,0:T(8,128)}', space=vmem, size = 0x20000, scoped, tag = 'scratch operand']
  %s0 = inlined_call_operand.hbm [shape: f32[2,128,256], index: 0, kind: input, shape index: {}]
  %s1 = inlined_call_operand.hbm [shape: f32[2,2,128], index: 1, kind: output, shape index: {}]
  %s2 = sld [smem:[#allocation0]]
  $region26: #{tpu_custom_call.1} parent=0
    _
  %s4 = ssub.s32 1, %s2
  %s5 = scalar_select 0, %s4, %s2
  $region1: #{tpu_custom_call.1} parent=0
    #allocation4 [shape = 'u8[262144]{0}', space=vmem, size = 0x40000, scoped, tag = 'input window, operand 0, single buffered']
    #allocation5 [shape = 's32[1]{0}', space=sflag, size = 0x4, scoped, tag = 'scoped memory for tpu_custom_call.1']
    #allocation6 [shape = 's32[1]{0}', space=sflag, size = 0x4, scoped, tag = 'scoped memory for tpu_custom_call.1']
    #allocation7 [shape = 'u8[2048]{0}', space=vmem, size = 0x800, scoped, tag = 'output window, operand 0, single buffered']
    %6 = vsyncpa [#allocation5], 0
    %7 = vsyncpa [#allocation6], 0
    // Predicated region
    $region2: #{tpu_custom_call.1} parent=1 // pred_check
      _
    $region3: #{tpu_custom_call.1} parent=1 // pred_check_branch
      %9 = sbr.rel (0) target = $region5
    $region4: #{tpu_custom_call.1} parent=1 // pred_region
      %11 = vsyncadd [#allocation5], 0
      %s12 = sshll.u32 %s0, 4
      %s13 = int_to_ptr.hbm [resolvable:$true] %s12
      %s14 = sshll.u32 [#allocation4], 4
      %s15 = int_to_ptr.vmem [resolvable:$true] %s14
      %20 = dma.hbm_to_vmem [thread:$0]  %s13, 8192, %s15, [#allocation5], 256, 256, 16
    $region5: #{tpu_custom_call.1} parent=1 // pred_fallthru
      _
    // Predicated region
    $region6: #{tpu_custom_call.1} parent=1 // pred_check
      _
    $region7: #{tpu_custom_call.1} parent=1 // pred_check_branch
      %22 = sbr.rel (0) target = $region9
    $region8: #{tpu_custom_call.1} parent=1 // pred_region
      %24 = dma.done [#allocation5], 8192
    $region9: #{tpu_custom_call.1} parent=1 // pred_fallthru
      _
    %p25 = scmp.eq.s32.totalorder 0, 0
    // Predicated region
    $region10: #{tpu_custom_call.1} parent=1 // pred_check
      %p26 = pneg %p25
    $region11: #{tpu_custom_call.1} parent=1 // pred_check_branch
      %28 = sbr.rel (%p26) target = $region13
    $region12: #{tpu_custom_call.1} parent=1 // pred_region
      %29 = vst [vmem:[#allocation2] sm:$0xff] 0.0
      %30 = vst [vmem:[#allocation2 + $0x8] sm:$0xff] 0.0
      %31 = vst [vmem:[#allocation2 + $0x10] sm:$0xff] 0.0
      %32 = vst [vmem:[#allocation2 + $0x18] sm:$0xff] 0.0
      %33 = vst [vmem:[#allocation2 + $0x20] sm:$0xff] 0.0
      %34 = vst [vmem:[#allocation2 + $0x28] sm:$0xff] 0.0
      %35 = vst [vmem:[#allocation2 + $0x30] sm:$0xff] 0.0
      %36 = vst [vmem:[#allocation2 + $0x38] sm:$0xff] 0.0
      %37 = vst [vmem:[#allocation2 + $0x40] sm:$0xff] 0.0
      %38 = vst [vmem:[#allocation2 + $0x48] sm:$0xff] 0.0
      %39 = vst [vmem:[#allocation2 + $0x50] sm:$0xff] 0.0
      %40 = vst [vmem:[#allocation2 + $0x58] sm:$0xff] 0.0
      %41 = vst [vmem:[#allocation2 + $0x60] sm:$0xff] 0.0
      %42 = vst [vmem:[#allocation2 + $0x68] sm:$0xff] 0.0
      %43 = vst [vmem:[#allocation2 + $0x70] sm:$0xff] 0.0
      %44 = vst [vmem:[#allocation2 + $0x78] sm:$0xff] 0.0
      %45 = vst [vmem:[#allocation2 + $0x80] sm:$0xff] 0.0
      %46 = vst [vmem:[#allocation2 + $0x88] sm:$0xff] 0.0
      %47 = vst [vmem:[#allocation2 + $0x90] sm:$0xff] 0.0
      %48 = vst [vmem:[#allocation2 + $0x98] sm:$0xff] 0.0
      %49 = vst [vmem:[#allocation2 + $0xa0] sm:$0xff] 0.0
      %50 = vst [vmem:[#allocation2 + $0xa8] sm:$0xff] 0.0
      %51 = vst [vmem:[#allocation2 + $0xb0] sm:$0xff] 0.0
      %52 = vst [vmem:[#allocation2 + $0xb8] sm:$0xff] 0.0
      %53 = vst [vmem:[#allocation2 + $0xc0] sm:$0xff] 0.0
      %54 = vst [vmem:[#allocation2 + $0xc8] sm:$0xff] 0.0
      %55 = vst [vmem:[#allocation2 + $0xd0] sm:$0xff] 0.0
      %56 = vst [vmem:[#allocation2 + $0xd8] sm:$0xff] 0.0
      %57 = vst [vmem:[#allocation2 + $0xe0] sm:$0xff] 0.0
      %58 = vst [vmem:[#allocation2 + $0xe8] sm:$0xff] 0.0
      %59 = vst [vmem:[#allocation2 + $0xf0] sm:$0xff] 0.0
      %60 = vst [vmem:[#allocation2 + $0xf8] sm:$0xff] 0.0
      %61 = vst [vmem:[#allocation3] sm:$0xff] -inf
      %62 = vst [vmem:[#allocation3 + $0x8] sm:$0xff] -inf
      %63 = vst [vmem:[#allocation3 + $0x10] sm:$0xff] -inf
      %64 = vst [vmem:[#allocation3 + $0x18] sm:$0xff] -inf
      %65 = vst [vmem:[#allocation3 + $0x20] sm:$0xff] -inf
      %66 = vst [vmem:[#allocation3 + $0x28] sm:$0xff] -inf
      %67 = vst [vmem:[#allocation3 + $0x30] sm:$0xff] -inf
      %68 = vst [vmem:[#allocation3 + $0x38] sm:$0xff] -inf
      %69 = vst [vmem:[#allocation3 + $0x40] sm:$0xff] -inf
      %70 = vst [vmem:[#allocation3 + $0x48] sm:$0xff] -inf
      %71 = vst [vmem:[#allocation3 + $0x50] sm:$0xff] -inf
      %72 = vst [vmem:[#allocation3 + $0x58] sm:$0xff] -inf
      %73 = vst [vmem:[#allocation3 + $0x60] sm:$0xff] -inf
      %74 = vst [vmem:[#allocation3 + $0x68] sm:$0xff] -inf
      %75 = vst [vmem:[#allocation3 + $0x70] sm:$0xff] -inf
      %76 = vst [vmem:[#allocation3 + $0x78] sm:$0xff] -inf
      %77 = vst [vmem:[#allocation3 + $0x80] sm:$0xff] -inf
      %78 = vst [vmem:[#allocation3 + $0x88] sm:$0xff] -inf
      %79 = vst [vmem:[#allocation3 + $0x90] sm:$0xff] -inf
      %80 = vst [vmem:[#allocation3 + $0x98] sm:$0xff] -inf
      %81 = vst [vmem:[#allocation3 + $0xa0] sm:$0xff] -inf
      %82 = vst [vmem:[#allocation3 + $0xa8] sm:$0xff] -inf
      %83 = vst [vmem:[#allocation3 + $0xb0] sm:$0xff] -inf
      %84 = vst [vmem:[#allocation3 + $0xb8] sm:$0xff] -inf
      %85 = vst [vmem:[#allocation3 + $0xc0] sm:$0xff] -inf
      %86 = vst [vmem:[#allocation3 + $0xc8] sm:$0xff] -inf
      %87 = vst [vmem:[#allocation3 + $0xd0] sm:$0xff] -inf
      %88 = vst [vmem:[#allocation3 + $0xd8] sm:$0xff] -inf
      %89 = vst [vmem:[#allocation3 + $0xe0] sm:$0xff] -inf
      %90 = vst [vmem:[#allocation3 + $0xe8] sm:$0xff] -inf
      %91 = vst [vmem:[#allocation3 + $0xf0] sm:$0xff] -inf
      %92 = vst [vmem:[#allocation3 + $0xf8] sm:$0xff] -inf
    $region13: #{tpu_custom_call.1} parent=1 // pred_fallthru
      _
    %v93 = vld [vmem:[#allocation4] sm:$0xff]
    %v94 = vld [vmem:[#allocation4 + $0x10] sm:$0xff]
    %v95 = vld [vmem:[#allocation4 + $0x20] sm:$0xff]
    %v96 = vld [vmem:[#allocation4 + $0x30] sm:$0xff]
    %v97 = vld [vmem:[#allocation4 + $0x40] sm:$0xff]
    %v98 = vld [vmem:[#allocation4 + $0x50] sm:$0xff]
    %v99 = vld [vmem:[#allocation4 + $0x60] sm:$0xff]
    %v100 = vld [vmem:[#allocation4 + $0x70] sm:$0xff]
    %v101 = vld [vmem:[#allocation4 + $0x80] sm:$0xff]
    %v102 = vld [vmem:[#allocation4 + $0x90] sm:$0xff]
    %v103 = vld [vmem:[#allocation4 + $0xa0] sm:$0xff]
    %v104 = vld [vmem:[#allocation4 + $0xb0] sm:$0xff]
    %v105 = vld [vmem:[#allocation4 + $0xc0] sm:$0xff]
    %v106 = vld [vmem:[#allocation4 + $0xd0] sm:$0xff]
    %v107 = vld [vmem:[#allocation4 + $0xe0] sm:$0xff]
    %v108 = vld [vmem:[#allocation4 + $0xf0] sm:$0xff]
    %v109 = vld [vmem:[#allocation4 + $0x100] sm:$0xff]
    %v110 = vld [vmem:[#allocation4 + $0x110] sm:$0xff]
    %v111 = vld [vmem:[#allocation4 + $0x120] sm:$0xff]
    %v112 = vld [vmem:[#allocation4 + $0x130] sm:$0xff]
    %v113 = vld [vmem:[#allocation4 + $0x140] sm:$0xff]
    %v114 = vld [vmem:[#allocation4 + $0x150] sm:$0xff]
    %v115 = vld [vmem:[#allocation4 + $0x160] sm:$0xff]
    %v116 = vld [vmem:[#allocation4 + $0x170] sm:$0xff]
    %v117 = vld [vmem:[#allocation4 + $0x180] sm:$0xff]
    %v118 = vld [vmem:[#allocation4 + $0x190] sm:$0xff]
    %v119 = vld [vmem:[#allocation4 + $0x1a0] sm:$0xff]
    %v120 = vld [vmem:[#allocation4 + $0x1b0] sm:$0xff]
    %v121 = vld [vmem:[#allocation4 + $0x1c0] sm:$0xff]
    %v122 = vld [vmem:[#allocation4 + $0x1d0] sm:$0xff]
    %v123 = vld [vmem:[#allocation4 + $0x1e0] sm:$0xff]
    %v124 = vld [vmem:[#allocation4 + $0x1f0] sm:$0xff]
    %v125 = vld [vmem:[#allocation4 + $0x8] sm:$0xff]
    %v126 = vld [vmem:[#allocation4 + $0x18] sm:$0xff]
    %v127 = vld [vmem:[#allocation4 + $0x28] sm:$0xff]
    %v128 = vld [vmem:[#allocation4 + $0x38] sm:$0xff]
    %v129 = vld [vmem:[#allocation4 + $0x48] sm:$0xff]
    %v130 = vld [vmem:[#allocation4 + $0x58] sm:$0xff]
    %v131 = vld [vmem:[#allocation4 + $0x68] sm:$0xff]
    %v132 = vld [vmem:[#allocation4 + $0x78] sm:$0xff]
    %v133 = vld [vmem:[#allocation4 + $0x88] sm:$0xff]
    %v134 = vld [vmem:[#allocation4 + $0x98] sm:$0xff]
    %v135 = vld [vmem:[#allocation4 + $0xa8] sm:$0xff]
    %v136 = vld [vmem:[#allocation4 + $0xb8] sm:$0xff]
    %v137 = vld [vmem:[#allocation4 + $0xc8] sm:$0xff]
    %v138 = vld [vmem:[#allocation4 + $0xd8] sm:$0xff]
    %v139 = vld [vmem:[#allocation4 + $0xe8] sm:$0xff]
    %v140 = vld [vmem:[#allocation4 + $0xf8] sm:$0xff]
    %v141 = vld [vmem:[#allocation4 + $0x108] sm:$0xff]
    %v142 = vld [vmem:[#allocation4 + $0x118] sm:$0xff]
    %v143 = vld [vmem:[#allocation4 + $0x128] sm:$0xff]
    %v144 = vld [vmem:[#allocation4 + $0x138] sm:$0xff]
    %v145 = vld [vmem:[#allocation4 + $0x148] sm:$0xff]
    %v146 = vld [vmem:[#allocation4 + $0x158] sm:$0xff]
    %v147 = vld [vmem:[#allocation4 + $0x168] sm:$0xff]
    %v148 = vld [vmem:[#allocation4 + $0x178] sm:$0xff]
    %v149 = vld [vmem:[#allocation4 + $0x188] sm:$0xff]
    %v150 = vld [vmem:[#allocation4 + $0x198] sm:$0xff]
    %v151 = vld [vmem:[#allocation4 + $0x1a8] sm:$0xff]
    %v152 = vld [vmem:[#allocation4 + $0x1b8] sm:$0xff]
    %v153 = vld [vmem:[#allocation4 + $0x1c8] sm:$0xff]
    %v154 = vld [vmem:[#allocation4 + $0x1d8] sm:$0xff]
    %v155 = vld [vmem:[#allocation4 + $0x1e8] sm:$0xff]
    %v156 = vld [vmem:[#allocation4 + $0x1f8] sm:$0xff]
    %v157 = vadd.f32 %v93, %v125
    %v158 = vadd.f32 %v94, %v126
    %v159 = vadd.f32 %v95, %v127
    %v160 = vadd.f32 %v96, %v128
    %v161 = vadd.f32 %v97, %v129
    %v162 = vadd.f32 %v98, %v130
    %v163 = vadd.f32 %v99, %v131
    %v164 = vadd.f32 %v100, %v132
    %v165 = vadd.f32 %v101, %v133
    %v166 = vadd.f32 %v102, %v134
    %v167 = vadd.f32 %v103, %v135
    %v168 = vadd.f32 %v104, %v136
    %v169 = vadd.f32 %v105, %v137
    %v170 = vadd.f32 %v106, %v138
    %v171 = vadd.f32 %v107, %v139
    %v172 = vadd.f32 %v108, %v140
    %v173 = vadd.f32 %v109, %v141
    %v174 = vadd.f32 %v110, %v142
    %v175 = vadd.f32 %v111, %v143
    %v176 = vadd.f32 %v112, %v144
    %v177 = vadd.f32 %v113, %v145
    %v178 = vadd.f32 %v114, %v146
    %v179 = vadd.f32 %v115, %v147
    %v180 = vadd.f32 %v116, %v148
    %v181 = vadd.f32 %v117, %v149
    %v182 = vadd.f32 %v118, %v150
    %v183 = vadd.f32 %v119, %v151
    %v184 = vadd.f32 %v120, %v152
    %v185 = vadd.f32 %v121, %v153
    %v186 = vadd.f32 %v122, %v154
    %v187 = vadd.f32 %v123, %v155
    %v188 = vadd.f32 %v124, %v156
    %v189 = vmax.f32 %v93, %v125
    %v190 = vmax.f32 %v94, %v126
    %v191 = vmax.f32 %v95, %v127
    %v192 = vmax.f32 %v96, %v128
    %v193 = vmax.f32 %v97, %v129
    %v194 = vmax.f32 %v98, %v130
    %v195 = vmax.f32 %v99, %v131
    %v196 = vmax.f32 %v100, %v132
    %v197 = vmax.f32 %v101, %v133
    %v198 = vmax.f32 %v102, %v134
    %v199 = vmax.f32 %v103, %v135
    %v200 = vmax.f32 %v104, %v136
    %v201 = vmax.f32 %v105, %v137
    %v202 = vmax.f32 %v106, %v138
    %v203 = vmax.f32 %v107, %v139
    %v204 = vmax.f32 %v108, %v140
    %v205 = vmax.f32 %v109, %v141
    %v206 = vmax.f32 %v110, %v142
    %v207 = vmax.f32 %v111, %v143
    %v208 = vmax.f32 %v112, %v144
    %v209 = vmax.f32 %v113, %v145
    %v210 = vmax.f32 %v114, %v146
    %v211 = vmax.f32 %v115, %v147
    %v212 = vmax.f32 %v116, %v148
    %v213 = vmax.f32 %v117, %v149
    %v214 = vmax.f32 %v118, %v150
    %v215 = vmax.f32 %v119, %v151
    %v216 = vmax.f32 %v120, %v152
    %v217 = vmax.f32 %v121, %v153
    %v218 = vmax.f32 %v122, %v154
    %v219 = vmax.f32 %v123, %v155
    %v220 = vmax.f32 %v124, %v156
    %v221 = vld [vmem:[#allocation2] sm:$0xff]
    %v222 = vld [vmem:[#allocation2 + $0x8] sm:$0xff]
    %v223 = vld [vmem:[#allocation2 + $0x10] sm:$0xff]
    %v224 = vld [vmem:[#allocation2 + $0x18] sm:$0xff]
    %v225 = vld [vmem:[#allocation2 + $0x20] sm:$0xff]
    %v226 = vld [vmem:[#allocation2 + $0x28] sm:$0xff]
    %v227 = vld [vmem:[#allocation2 + $0x30] sm:$0xff]
    %v228 = vld [vmem:[#allocation2 + $0x38] sm:$0xff]
    %v229 = vld [vmem:[#allocation2 + $0x40] sm:$0xff]
    %v230 = vld [vmem:[#allocation2 + $0x48] sm:$0xff]
    %v231 = vld [vmem:[#allocation2 + $0x50] sm:$0xff]
    %v232 = vld [vmem:[#allocation2 + $0x58] sm:$0xff]
    %v233 = vld [vmem:[#allocation2 + $0x60] sm:$0xff]
    %v234 = vld [vmem:[#allocation2 + $0x68] sm:$0xff]
    %v235 = vld [vmem:[#allocation2 + $0x70] sm:$0xff]
    %v236 = vld [vmem:[#allocation2 + $0x78] sm:$0xff]
    %v237 = vld [vmem:[#allocation2 + $0x80] sm:$0xff]
    %v238 = vld [vmem:[#allocation2 + $0x88] sm:$0xff]
    %v239 = vld [vmem:[#allocation2 + $0x90] sm:$0xff]
    %v240 = vld [vmem:[#allocation2 + $0x98] sm:$0xff]
    %v241 = vld [vmem:[#allocation2 + $0xa0] sm:$0xff]
    %v242 = vld [vmem:[#allocation2 + $0xa8] sm:$0xff]
    %v243 = vld [vmem:[#allocation2 + $0xb0] sm:$0xff]
    %v244 = vld [vmem:[#allocation2 + $0xb8] sm:$0xff]
    %v245 = vld [vmem:[#allocation2 + $0xc0] sm:$0xff]
    %v246 = vld [vmem:[#allocation2 + $0xc8] sm:$0xff]
    %v247 = vld [vmem:[#allocation2 + $0xd0] sm:$0xff]
    %v248 = vld [vmem:[#allocation2 + $0xd8] sm:$0xff]
    %v249 = vld [vmem:[#allocation2 + $0xe0] sm:$0xff]
    %v250 = vld [vmem:[#allocation2 + $0xe8] sm:$0xff]
    %v251 = vld [vmem:[#allocation2 + $0xf0] sm:$0xff]
    %v252 = vld [vmem:[#allocation2 + $0xf8] sm:$0xff]
    %v253 = vadd.f32 %v221, %v157
    %v254 = vadd.f32 %v222, %v158
    %v255 = vadd.f32 %v223, %v159
    %v256 = vadd.f32 %v224, %v160
    %v257 = vadd.f32 %v225, %v161
    %v258 = vadd.f32 %v226, %v162
    %v259 = vadd.f32 %v227, %v163
    %v260 = vadd.f32 %v228, %v164
    %v261 = vadd.f32 %v229, %v165
    %v262 = vadd.f32 %v230, %v166
    %v263 = vadd.f32 %v231, %v167
    %v264 = vadd.f32 %v232, %v168
    %v265 = vadd.f32 %v233, %v169
    %v266 = vadd.f32 %v234, %v170
    %v267 = vadd.f32 %v235, %v171
    %v268 = vadd.f32 %v236, %v172
    %v269 = vadd.f32 %v237, %v173
    %v270 = vadd.f32 %v238, %v174
    %v271 = vadd.f32 %v239, %v175
    %v272 = vadd.f32 %v240, %v176
    %v273 = vadd.f32 %v241, %v177
    %v274 = vadd.f32 %v242, %v178
    %v275 = vadd.f32 %v243, %v179
    %v276 = vadd.f32 %v244, %v180
    %v277 = vadd.f32 %v245, %v181
    %v278 = vadd.f32 %v246, %v182
    %v279 = vadd.f32 %v247, %v183
    %v280 = vadd.f32 %v248, %v184
    %v281 = vadd.f32 %v249, %v185
    %v282 = vadd.f32 %v250, %v186
    %v283 = vadd.f32 %v251, %v187
    %v284 = vadd.f32 %v252, %v188
    %285 = vst [vmem:[#allocation2] sm:$0xff] %v253
    %286 = vst [vmem:[#allocation2 + $0x8] sm:$0xff] %v254
    %287 = vst [vmem:[#allocation2 + $0x10] sm:$0xff] %v255
    %288 = vst [vmem:[#allocation2 + $0x18] sm:$0xff] %v256
    %289 = vst [vmem:[#allocation2 + $0x20] sm:$0xff] %v257
    %290 = vst [vmem:[#allocation2 + $0x28] sm:$0xff] %v258
    %291 = vst [vmem:[#allocation2 + $0x30] sm:$0xff] %v259
    %292 = vst [vmem:[#allocation2 + $0x38] sm:$0xff] %v260
    %293 = vst [vmem:[#allocation2 + $0x40] sm:$0xff] %v261
    %294 = vst [vmem:[#allocation2 + $0x48] sm:$0xff] %v262
    %295 = vst [vmem:[#allocation2 + $0x50] sm:$0xff] %v263
    %296 = vst [vmem:[#allocation2 + $0x58] sm:$0xff] %v264
    %297 = vst [vmem:[#allocation2 + $0x60] sm:$0xff] %v265
    %298 = vst [vmem:[#allocation2 + $0x68] sm:$0xff] %v266
    %299 = vst [vmem:[#allocation2 + $0x70] sm:$0xff] %v267
    %300 = vst [vmem:[#allocation2 + $0x78] sm:$0xff] %v268
    %301 = vst [vmem:[#allocation2 + $0x80] sm:$0xff] %v269
    %302 = vst [vmem:[#allocation2 + $0x88] sm:$0xff] %v270
    %303 = vst [vmem:[#allocation2 + $0x90] sm:$0xff] %v271
    %304 = vst [vmem:[#allocation2 + $0x98] sm:$0xff] %v272
    %305 = vst [vmem:[#allocation2 + $0xa0] sm:$0xff] %v273
    %306 = vst [vmem:[#allocation2 + $0xa8] sm:$0xff] %v274
    %307 = vst [vmem:[#allocation2 + $0xb0] sm:$0xff] %v275
    %308 = vst [vmem:[#allocation2 + $0xb8] sm:$0xff] %v276
    %309 = vst [vmem:[#allocation2 + $0xc0] sm:$0xff] %v277
    %310 = vst [vmem:[#allocation2 + $0xc8] sm:$0xff] %v278
    %311 = vst [vmem:[#allocation2 + $0xd0] sm:$0xff] %v279
    %312 = vst [vmem:[#allocation2 + $0xd8] sm:$0xff] %v280
    %313 = vst [vmem:[#allocation2 + $0xe0] sm:$0xff] %v281
    %314 = vst [vmem:[#allocation2 + $0xe8] sm:$0xff] %v282
    %315 = vst [vmem:[#allocation2 + $0xf0] sm:$0xff] %v283
    %316 = vst [vmem:[#allocation2 + $0xf8] sm:$0xff] %v284
    %v317 = vld [vmem:[#allocation3] sm:$0xff]
    %v318 = vld [vmem:[#allocation3 + $0x8] sm:$0xff]
    %v319 = vld [vmem:[#allocation3 + $0x10] sm:$0xff]
    %v320 = vld [vmem:[#allocation3 + $0x18] sm:$0xff]
    %v321 = vld [vmem:[#allocation3 + $0x20] sm:$0xff]
    %v322 = vld [vmem:[#allocation3 + $0x28] sm:$0xff]
    %v323 = vld [vmem:[#allocation3 + $0x30] sm:$0xff]
    %v324 = vld [vmem:[#allocation3 + $0x38] sm:$0xff]
    %v325 = vld [vmem:[#allocation3 + $0x40] sm:$0xff]
    %v326 = vld [vmem:[#allocation3 + $0x48] sm:$0xff]
    %v327 = vld [vmem:[#allocation3 + $0x50] sm:$0xff]
    %v328 = vld [vmem:[#allocation3 + $0x58] sm:$0xff]
    %v329 = vld [vmem:[#allocation3 + $0x60] sm:$0xff]
    %v330 = vld [vmem:[#allocation3 + $0x68] sm:$0xff]
    %v331 = vld [vmem:[#allocation3 + $0x70] sm:$0xff]
    %v332 = vld [vmem:[#allocation3 + $0x78] sm:$0xff]
    %v333 = vld [vmem:[#allocation3 + $0x80] sm:$0xff]
    %v334 = vld [vmem:[#allocation3 + $0x88] sm:$0xff]
    %v335 = vld [vmem:[#allocation3 + $0x90] sm:$0xff]
    %v336 = vld [vmem:[#allocation3 + $0x98] sm:$0xff]
    %v337 = vld [vmem:[#allocation3 + $0xa0] sm:$0xff]
    %v338 = vld [vmem:[#allocation3 + $0xa8] sm:$0xff]
    %v339 = vld [vmem:[#allocation3 + $0xb0] sm:$0xff]
    %v340 = vld [vmem:[#allocation3 + $0xb8] sm:$0xff]
    %v341 = vld [vmem:[#allocation3 + $0xc0] sm:$0xff]
    %v342 = vld [vmem:[#allocation3 + $0xc8] sm:$0xff]
    %v343 = vld [vmem:[#allocation3 + $0xd0] sm:$0xff]
    %v344 = vld [vmem:[#allocation3 + $0xd8] sm:$0xff]
    %v345 = vld [vmem:[#allocation3 + $0xe0] sm:$0xff]
    %v346 = vld [vmem:[#allocation3 + $0xe8] sm:$0xff]
    %v347 = vld [vmem:[#allocation3 + $0xf0] sm:$0xff]
    %v348 = vld [vmem:[#allocation3 + $0xf8] sm:$0xff]
    %v349 = vmax.f32 %v317, %v189
    %v350 = vmax.f32 %v318, %v190
    %v351 = vmax.f32 %v319, %v191
    %v352 = vmax.f32 %v320, %v192
    %v353 = vmax.f32 %v321, %v193
    %v354 = vmax.f32 %v322, %v194
    %v355 = vmax.f32 %v323, %v195
    %v356 = vmax.f32 %v324, %v196
    %v357 = vmax.f32 %v325, %v197
    %v358 = vmax.f32 %v326, %v198
    %v359 = vmax.f32 %v327, %v199
    %v360 = vmax.f32 %v328, %v200
    %v361 = vmax.f32 %v329, %v201
    %v362 = vmax.f32 %v330, %v202
    %v363 = vmax.f32 %v331, %v203
    %v364 = vmax.f32 %v332, %v204
    %v365 = vmax.f32 %v333, %v205
    %v366 = vmax.f32 %v334, %v206
    %v367 = vmax.f32 %v335, %v207
    %v368 = vmax.f32 %v336, %v208
    %v369 = vmax.f32 %v337, %v209
    %v370 = vmax.f32 %v338, %v210
    %v371 = vmax.f32 %v339, %v211
    %v372 = vmax.f32 %v340, %v212
    %v373 = vmax.f32 %v341, %v213
    %v374 = vmax.f32 %v342, %v214
    %v375 = vmax.f32 %v343, %v215
    %v376 = vmax.f32 %v344, %v216
    %v377 = vmax.f32 %v345, %v217
    %v378 = vmax.f32 %v346, %v218
    %v379 = vmax.f32 %v347, %v219
    %v380 = vmax.f32 %v348, %v220
    %381 = vst [vmem:[#allocation3] sm:$0xff] %v349
    %382 = vst [vmem:[#allocation3 + $0x8] sm:$0xff] %v350
    %383 = vst [vmem:[#allocation3 + $0x10] sm:$0xff] %v351
    %384 = vst [vmem:[#allocation3 + $0x18] sm:$0xff] %v352
    %385 = vst [vmem:[#allocation3 + $0x20] sm:$0xff] %v353
    %386 = vst [vmem:[#allocation3 + $0x28] sm:$0xff] %v354
    %387 = vst [vmem:[#allocation3 + $0x30] sm:$0xff] %v355
    %388 = vst [vmem:[#allocation3 + $0x38] sm:$0xff] %v356
    %389 = vst [vmem:[#allocation3 + $0x40] sm:$0xff] %v357
    %390 = vst [vmem:[#allocation3 + $0x48] sm:$0xff] %v358
    %391 = vst [vmem:[#allocation3 + $0x50] sm:$0xff] %v359
    %392 = vst [vmem:[#allocation3 + $0x58] sm:$0xff] %v360
    %393 = vst [vmem:[#allocation3 + $0x60] sm:$0xff] %v361
    %394 = vst [vmem:[#allocation3 + $0x68] sm:$0xff] %v362
    %395 = vst [vmem:[#allocation3 + $0x70] sm:$0xff] %v363
    %396 = vst [vmem:[#allocation3 + $0x78] sm:$0xff] %v364
    %397 = vst [vmem:[#allocation3 + $0x80] sm:$0xff] %v365
    %398 = vst [vmem:[#allocation3 + $0x88] sm:$0xff] %v366
    %399 = vst [vmem:[#allocation3 + $0x90] sm:$0xff] %v367
    %400 = vst [vmem:[#allocation3 + $0x98] sm:$0xff] %v368
    %401 = vst [vmem:[#allocation3 + $0xa0] sm:$0xff] %v369
    %402 = vst [vmem:[#allocation3 + $0xa8] sm:$0xff] %v370
    %403 = vst [vmem:[#allocation3 + $0xb0] sm:$0xff] %v371
    %404 = vst [vmem:[#allocation3 + $0xb8] sm:$0xff] %v372
    %405 = vst [vmem:[#allocation3 + $0xc0] sm:$0xff] %v373
    %406 = vst [vmem:[#allocation3 + $0xc8] sm:$0xff] %v374
    %407 = vst [vmem:[#allocation3 + $0xd0] sm:$0xff] %v375
    %408 = vst [vmem:[#allocation3 + $0xd8] sm:$0xff] %v376
    %409 = vst [vmem:[#allocation3 + $0xe0] sm:$0xff] %v377
    %410 = vst [vmem:[#allocation3 + $0xe8] sm:$0xff] %v378
    %411 = vst [vmem:[#allocation3 + $0xf0] sm:$0xff] %v379
    %412 = vst [vmem:[#allocation3 + $0xf8] sm:$0xff] %v380
    // Predicated region
    $region14: #{tpu_custom_call.1} parent=1 // pred_check
      %p413 = pneg %p25
    $region15: #{tpu_custom_call.1} parent=1 // pred_check_branch
      %415 = sbr.rel (%p413) target = $region17
    $region16: #{tpu_custom_call.1} parent=1 // pred_region
      %v416 = vld [vmem:[#allocation2] sm:$0xff]
      %v417 = vld [vmem:[#allocation2 + $0x8] sm:$0xff]
      %v418 = vld [vmem:[#allocation2 + $0x10] sm:$0xff]
      %v419 = vld [vmem:[#allocation2 + $0x18] sm:$0xff]
      %v420 = vld [vmem:[#allocation2 + $0x20] sm:$0xff]
      %v421 = vld [vmem:[#allocation2 + $0x28] sm:$0xff]
      %v422 = vld [vmem:[#allocation2 + $0x30] sm:$0xff]
      %v423 = vld [vmem:[#allocation2 + $0x38] sm:$0xff]
      %v424 = vld [vmem:[#allocation2 + $0x40] sm:$0xff]
      %v425 = vld [vmem:[#allocation2 + $0x48] sm:$0xff]
      %v426 = vld [vmem:[#allocation2 + $0x50] sm:$0xff]
      %v427 = vld [vmem:[#allocation2 + $0x58] sm:$0xff]
      %v428 = vld [vmem:[#allocation2 + $0x60] sm:$0xff]
      %v429 = vld [vmem:[#allocation2 + $0x68] sm:$0xff]
      %v430 = vld [vmem:[#allocation2 + $0x70] sm:$0xff]
      %v431 = vld [vmem:[#allocation2 + $0x78] sm:$0xff]
      %v432 = vld [vmem:[#allocation2 + $0x80] sm:$0xff]
      %v433 = vld [vmem:[#allocation2 + $0x88] sm:$0xff]
      %v434 = vld [vmem:[#allocation2 + $0x90] sm:$0xff]
      %v435 = vld [vmem:[#allocation2 + $0x98] sm:$0xff]
      %v436 = vld [vmem:[#allocation2 + $0xa0] sm:$0xff]
      %v437 = vld [vmem:[#allocation2 + $0xa8] sm:$0xff]
      %v438 = vld [vmem:[#allocation2 + $0xb0] sm:$0xff]
      %v439 = vld [vmem:[#allocation2 + $0xb8] sm:$0xff]
      %v440 = vld [vmem:[#allocation2 + $0xc0] sm:$0xff]
      %v441 = vld [vmem:[#allocation2 + $0xc8] sm:$0xff]
      %v442 = vld [vmem:[#allocation2 + $0xd0] sm:$0xff]
      %v443 = vld [vmem:[#allocation2 + $0xd8] sm:$0xff]
      %v444 = vld [vmem:[#allocation2 + $0xe0] sm:$0xff]
      %v445 = vld [vmem:[#allocation2 + $0xe8] sm:$0xff]
      %v446 = vld [vmem:[#allocation2 + $0xf0] sm:$0xff]
      %v447 = vld [vmem:[#allocation2 + $0xf8] sm:$0xff]
      %448 = vadd.xlane.f32.xlu0 %v416
      %v449 = vpop.xlane.xlu0 %448
      %450 = vadd.xlane.f32.xlu0 %v417
      %v451 = vpop.xlane.xlu0 %450
      %452 = vadd.xlane.f32.xlu0 %v418
      %v453 = vpop.xlane.xlu0 %452
      %454 = vadd.xlane.f32.xlu0 %v419
      %v455 = vpop.xlane.xlu0 %454
      %456 = vadd.xlane.f32.xlu0 %v420
      %v457 = vpop.xlane.xlu0 %456
      %458 = vadd.xlane.f32.xlu0 %v421
      %v459 = vpop.xlane.xlu0 %458
      %460 = vadd.xlane.f32.xlu0 %v422
      %v461 = vpop.xlane.xlu0 %460
      %462 = vadd.xlane.f32.xlu0 %v423
      %v463 = vpop.xlane.xlu0 %462
      %464 = vadd.xlane.f32.xlu0 %v424
      %v465 = vpop.xlane.xlu0 %464
      %466 = vadd.xlane.f32.xlu0 %v425
      %v467 = vpop.xlane.xlu0 %466
      %468 = vadd.xlane.f32.xlu0 %v426
      %v469 = vpop.xlane.xlu0 %468
      %470 = vadd.xlane.f32.xlu0 %v427
      %v471 = vpop.xlane.xlu0 %470
      %472 = vadd.xlane.f32.xlu0 %v428
      %v473 = vpop.xlane.xlu0 %472
      %474 = vadd.xlane.f32.xlu0 %v429
      %v475 = vpop.xlane.xlu0 %474
      %476 = vadd.xlane.f32.xlu0 %v430
      %v477 = vpop.xlane.xlu0 %476
      %478 = vadd.xlane.f32.xlu0 %v431
      %v479 = vpop.xlane.xlu0 %478
      %480 = vadd.xlane.f32.xlu0 %v432
      %v481 = vpop.xlane.xlu0 %480
      %482 = vadd.xlane.f32.xlu0 %v433
      %v483 = vpop.xlane.xlu0 %482
      %484 = vadd.xlane.f32.xlu0 %v434
      %v485 = vpop.xlane.xlu0 %484
      %486 = vadd.xlane.f32.xlu0 %v435
      %v487 = vpop.xlane.xlu0 %486
      %488 = vadd.xlane.f32.xlu0 %v436
      %v489 = vpop.xlane.xlu0 %488
      %490 = vadd.xlane.f32.xlu0 %v437
      %v491 = vpop.xlane.xlu0 %490
      %492 = vadd.xlane.f32.xlu0 %v438
      %v493 = vpop.xlane.xlu0 %492
      %494 = vadd.xlane.f32.xlu0 %v439
      %v495 = vpop.xlane.xlu0 %494
      %496 = vadd.xlane.f32.xlu0 %v440
      %v497 = vpop.xlane.xlu0 %496
      %498 = vadd.xlane.f32.xlu0 %v441
      %v499 = vpop.xlane.xlu0 %498
      %500 = vadd.xlane.f32.xlu0 %v442
      %v501 = vpop.xlane.xlu0 %500
      %502 = vadd.xlane.f32.xlu0 %v443
      %v503 = vpop.xlane.xlu0 %502
      %504 = vadd.xlane.f32.xlu0 %v444
      %v505 = vpop.xlane.xlu0 %504
      %506 = vadd.xlane.f32.xlu0 %v445
      %v507 = vpop.xlane.xlu0 %506
      %508 = vadd.xlane.f32.xlu0 %v446
      %v509 = vpop.xlane.xlu0 %508
      %510 = vadd.xlane.f32.xlu0 %v447
      %v511 = vpop.xlane.xlu0 %510
      %v512 = vmul.f32 %v449, 0.00390625
      %v513 = vmul.f32 %v451, 0.00390625
      %v514 = vmul.f32 %v453, 0.00390625
      %v515 = vmul.f32 %v455, 0.00390625
      %v516 = vmul.f32 %v457, 0.00390625
      %v517 = vmul.f32 %v459, 0.00390625
      %v518 = vmul.f32 %v461, 0.00390625
      %v519 = vmul.f32 %v463, 0.00390625
      %v520 = vmul.f32 %v465, 0.00390625
      %v521 = vmul.f32 %v467, 0.00390625
      %v522 = vmul.f32 %v469, 0.00390625
      %v523 = vmul.f32 %v471, 0.00390625
      %v524 = vmul.f32 %v473, 0.00390625
      %v525 = vmul.f32 %v475, 0.00390625
      %v526 = vmul.f32 %v477, 0.00390625
      %v527 = vmul.f32 %v479, 0.00390625
      %v528 = vmul.f32 %v481, 0.00390625
      %v529 = vmul.f32 %v483, 0.00390625
      %v530 = vmul.f32 %v485, 0.00390625
      %v531 = vmul.f32 %v487, 0.00390625
      %v532 = vmul.f32 %v489, 0.00390625
      %v533 = vmul.f32 %v491, 0.00390625
      %v534 = vmul.f32 %v493, 0.00390625
      %v535 = vmul.f32 %v495, 0.00390625
      %v536 = vmul.f32 %v497, 0.00390625
      %v537 = vmul.f32 %v499, 0.00390625
      %v538 = vmul.f32 %v501, 0.00390625
      %v539 = vmul.f32 %v503, 0.00390625
      %v540 = vmul.f32 %v505, 0.00390625
      %v541 = vmul.f32 %v507, 0.00390625
      %v542 = vmul.f32 %v509, 0.00390625
      %v543 = vmul.f32 %v511, 0.00390625
      %v544 = vld [vmem:[#allocation3] sm:$0xff]
      %v545 = vld [vmem:[#allocation3 + $0x8] sm:$0xff]
      %v546 = vld [vmem:[#allocation3 + $0x10] sm:$0xff]
      %v547 = vld [vmem:[#allocation3 + $0x18] sm:$0xff]
      %v548 = vld [vmem:[#allocation3 + $0x20] sm:$0xff]
      %v549 = vld [vmem:[#allocation3 + $0x28] sm:$0xff]
      %v550 = vld [vmem:[#allocation3 + $0x30] sm:$0xff]
      %v551 = vld [vmem:[#allocation3 + $0x38] sm:$0xff]
      %v552 = vld [vmem:[#allocation3 + $0x40] sm:$0xff]
      %v553 = vld [vmem:[#allocation3 + $0x48] sm:$0xff]
      %v554 = vld [vmem:[#allocation3 + $0x50] sm:$0xff]
      %v555 = vld [vmem:[#allocation3 + $0x58] sm:$0xff]
      %v556 = vld [vmem:[#allocation3 + $0x60] sm:$0xff]
      %v557 = vld [vmem:[#allocation3 + $0x68] sm:$0xff]
      %v558 = vld [vmem:[#allocation3 + $0x70] sm:$0xff]
      %v559 = vld [vmem:[#allocation3 + $0x78] sm:$0xff]
      %v560 = vld [vmem:[#allocation3 + $0x80] sm:$0xff]
      %v561 = vld [vmem:[#allocation3 + $0x88] sm:$0xff]
      %v562 = vld [vmem:[#allocation3 + $0x90] sm:$0xff]
      %v563 = vld [vmem:[#allocation3 + $0x98] sm:$0xff]
      %v564 = vld [vmem:[#allocation3 + $0xa0] sm:$0xff]
      %v565 = vld [vmem:[#allocation3 + $0xa8] sm:$0xff]
      %v566 = vld [vmem:[#allocation3 + $0xb0] sm:$0xff]
      %v567 = vld [vmem:[#allocation3 + $0xb8] sm:$0xff]
      %v568 = vld [vmem:[#allocation3 + $0xc0] sm:$0xff]
      %v569 = vld [vmem:[#allocation3 + $0xc8] sm:$0xff]
      %v570 = vld [vmem:[#allocation3 + $0xd0] sm:$0xff]
      %v571 = vld [vmem:[#allocation3 + $0xd8] sm:$0xff]
      %v572 = vld [vmem:[#allocation3 + $0xe0] sm:$0xff]
      %v573 = vld [vmem:[#allocation3 + $0xe8] sm:$0xff]
      %v574 = vld [vmem:[#allocation3 + $0xf0] sm:$0xff]
      %v575 = vld [vmem:[#allocation3 + $0xf8] sm:$0xff]
      %576 = vmax.xlane.f32.xlu0 %v544
      %v577 = vpop.xlane.xlu0 %576
      %578 = vmax.xlane.f32.xlu0 %v545
      %v579 = vpop.xlane.xlu0 %578
      %580 = vmax.xlane.f32.xlu0 %v546
      %v581 = vpop.xlane.xlu0 %580
      %582 = vmax.xlane.f32.xlu0 %v547
      %v583 = vpop.xlane.xlu0 %582
      %584 = vmax.xlane.f32.xlu0 %v548
      %v585 = vpop.xlane.xlu0 %584
      %586 = vmax.xlane.f32.xlu0 %v549
      %v587 = vpop.xlane.xlu0 %586
      %588 = vmax.xlane.f32.xlu0 %v550
      %v589 = vpop.xlane.xlu0 %588
      %590 = vmax.xlane.f32.xlu0 %v551
      %v591 = vpop.xlane.xlu0 %590
      %592 = vmax.xlane.f32.xlu0 %v552
      %v593 = vpop.xlane.xlu0 %592
      %594 = vmax.xlane.f32.xlu0 %v553
      %v595 = vpop.xlane.xlu0 %594
      %596 = vmax.xlane.f32.xlu0 %v554
      %v597 = vpop.xlane.xlu0 %596
      %598 = vmax.xlane.f32.xlu0 %v555
      %v599 = vpop.xlane.xlu0 %598
      %600 = vmax.xlane.f32.xlu0 %v556
      %v601 = vpop.xlane.xlu0 %600
      %602 = vmax.xlane.f32.xlu0 %v557
      %v603 = vpop.xlane.xlu0 %602
      %604 = vmax.xlane.f32.xlu0 %v558
      %v605 = vpop.xlane.xlu0 %604
      %606 = vmax.xlane.f32.xlu0 %v559
      %v607 = vpop.xlane.xlu0 %606
      %608 = vmax.xlane.f32.xlu0 %v560
      %v609 = vpop.xlane.xlu0 %608
      %610 = vmax.xlane.f32.xlu0 %v561
      %v611 = vpop.xlane.xlu0 %610
      %612 = vmax.xlane.f32.xlu0 %v562
      %v613 = vpop.xlane.xlu0 %612
      %614 = vmax.xlane.f32.xlu0 %v563
      %v615 = vpop.xlane.xlu0 %614
      %616 = vmax.xlane.f32.xlu0 %v564
      %v617 = vpop.xlane.xlu0 %616
      %618 = vmax.xlane.f32.xlu0 %v565
      %v619 = vpop.xlane.xlu0 %618
      %620 = vmax.xlane.f32.xlu0 %v566
      %v621 = vpop.xlane.xlu0 %620
      %622 = vmax.xlane.f32.xlu0 %v567
      %v623 = vpop.xlane.xlu0 %622
      %624 = vmax.xlane.f32.xlu0 %v568
      %v625 = vpop.xlane.xlu0 %624
      %626 = vmax.xlane.f32.xlu0 %v569
      %v627 = vpop.xlane.xlu0 %626
      %628 = vmax.xlane.f32.xlu0 %v570
      %v629 = vpop.xlane.xlu0 %628
      %630 = vmax.xlane.f32.xlu0 %v571
      %v631 = vpop.xlane.xlu0 %630
      %632 = vmax.xlane.f32.xlu0 %v572
      %v633 = vpop.xlane.xlu0 %632
      %634 = vmax.xlane.f32.xlu0 %v573
      %v635 = vpop.xlane.xlu0 %634
      %636 = vmax.xlane.f32.xlu0 %v574
      %v637 = vpop.xlane.xlu0 %636
      %638 = vmax.xlane.f32.xlu0 %v575
      %v639 = vpop.xlane.xlu0 %638
      %v672 = vlaneseq
      %v673 = vand.u32 %v672, 127
      %v674 = vperm.slane %v512, %v673
      %v675 = vadd.s32 %v673, 4294967288
      %v676 = vperm.slane %v513, %v675
      %vm677 = vcmask 130112
      %v678 = vsel %vm677, %v676, %v674
      %v679 = vadd.s32 %v673, 4294967280
      %v680 = vperm.slane %v514, %v679
      %vm681 = vcmask 195712
      %v682 = vsel %vm681, %v680, %v678
      %v683 = vadd.s32 %v673, 4294967272
      %v684 = vperm.slane %v515, %v683
      %vm685 = vcmask 261312
      %v686 = vsel %vm685, %v684, %v682
      %v687 = vadd.s32 %v673, 4294967264
      %v688 = vperm.slane %v516, %v687
      %vm689 = vcmask 326912
      %v690 = vsel %vm689, %v688, %v686
      %v691 = vadd.s32 %v673, 4294967256
      %v692 = vperm.slane %v517, %v691
      %vm693 = vcmask 392512
      %v694 = vsel %vm693, %v692, %v690
      %v695 = vadd.s32 %v673, 4294967248
      %v696 = vperm.slane %v518, %v695
      %vm697 = vcmask 458112
      %v698 = vsel %vm697, %v696, %v694
      %v699 = vadd.s32 %v673, 4294967240
      %v700 = vperm.slane %v519, %v699
      %vm701 = vcmask 523712
      %v702 = vsel %vm701, %v700, %v698
      %v703 = vadd.s32 %v673, 4294967232
      %v704 = vperm.slane %v520, %v703
      %vm705 = vcmask 589312
      %v706 = vsel %vm705, %v704, %v702
      %v707 = vadd.s32 %v673, 4294967224
      %v708 = vperm.slane %v521, %v707
      %vm709 = vcmask 654912
      %v710 = vsel %vm709, %v708, %v706
      %v711 = vadd.s32 %v673, 4294967216
      %v712 = vperm.slane %v522, %v711
      %vm713 = vcmask 720512
      %v714 = vsel %vm713, %v712, %v710
      %v715 = vadd.s32 %v673, 4294967208
      %v716 = vperm.slane %v523, %v715
      %vm717 = vcmask 786112
      %v718 = vsel %vm717, %v716, %v714
      %v719 = vadd.s32 %v673, 4294967200
      %v720 = vperm.slane %v524, %v719
      %vm721 = vcmask 851712
      %v722 = vsel %vm721, %v720, %v718
      %v723 = vadd.s32 %v673, 4294967192
      %v724 = vperm.slane %v525, %v723
      %vm725 = vcmask 917312
      %v726 = vsel %vm725, %v724, %v722
      %v727 = vadd.s32 %v673, 4294967184
      %v728 = vperm.slane %v526, %v727
      %vm729 = vcmask 982912
      %v730 = vsel %vm729, %v728, %v726
      %v731 = vadd.s32 %v673, 4294967176
      %v732 = vperm.slane %v527, %v731
      %vm733 = vcmask 1048512
      %v734 = vsel %vm733, %v732, %v730
      %v735 = vperm.slane %v528, %v673
      %v736 = vperm.slane %v529, %v675
      %v737 = vsel %vm677, %v736, %v735
      %v738 = vperm.slane %v530, %v679
      %v739 = vsel %vm681, %v738, %v737
      %v740 = vperm.slane %v531, %v683
      %v741 = vsel %vm685, %v740, %v739
      %v742 = vperm.slane %v532, %v687
      %v743 = vsel %vm689, %v742, %v741
      %v744 = vperm.slane %v533, %v691
      %v745 = vsel %vm693, %v744, %v743
      %v746 = vperm.slane %v534, %v695
      %v747 = vsel %vm697, %v746, %v745
      %v748 = vperm.slane %v535, %v699
      %v749 = vsel %vm701, %v748, %v747
      %v750 = vperm.slane %v536, %v703
      %v751 = vsel %vm705, %v750, %v749
      %v752 = vperm.slane %v537, %v707
      %v753 = vsel %vm709, %v752, %v751
      %v754 = vperm.slane %v538, %v711
      %v755 = vsel %vm713, %v754, %v753
      %v756 = vperm.slane %v539, %v715
      %v757 = vsel %vm717, %v756, %v755
      %v758 = vperm.slane %v540, %v719
      %v759 = vsel %vm721, %v758, %v757
      %v760 = vperm.slane %v541, %v723
      %v761 = vsel %vm725, %v760, %v759
      %v762 = vperm.slane %v542, %v727
      %v763 = vsel %vm729, %v762, %v761
      %v764 = vperm.slane %v543, %v731
      %v765 = vsel %vm733, %v764, %v763
      %vm766 = vcmask 1041409
      %v767 = vsel %vm766, %v765, %v734
      %769 = vst [vmem:[#allocation7] sm:$0x3] %v767
      %v802 = vperm.slane %v577, %v673
      %v803 = vperm.slane %v579, %v675
      %v804 = vsel %vm677, %v803, %v802
      %v805 = vperm.slane %v581, %v679
      %v806 = vsel %vm681, %v805, %v804
      %v807 = vperm.slane %v583, %v683
      %v808 = vsel %vm685, %v807, %v806
      %v809 = vperm.slane %v585, %v687
      %v810 = vsel %vm689, %v809, %v808
      %v811 = vperm.slane %v587, %v691
      %v812 = vsel %vm693, %v811, %v810
      %v813 = vperm.slane %v589, %v695
      %v814 = vsel %vm697, %v813, %v812
      %v815 = vperm.slane %v591, %v699
      %v816 = vsel %vm701, %v815, %v814
      %v817 = vperm.slane %v593, %v703
      %v818 = vsel %vm705, %v817, %v816
      %v819 = vperm.slane %v595, %v707
      %v820 = vsel %vm709, %v819, %v818
      %v821 = vperm.slane %v597, %v711
      %v822 = vsel %vm713, %v821, %v820
      %v823 = vperm.slane %v599, %v715
      %v824 = vsel %vm717, %v823, %v822
      %v825 = vperm.slane %v601, %v719
      %v826 = vsel %vm721, %v825, %v824
      %v827 = vperm.slane %v603, %v723
      %v828 = vsel %vm725, %v827, %v826
      %v829 = vperm.slane %v605, %v727
      %v830 = vsel %vm729, %v829, %v828
      %v831 = vperm.slane %v607, %v731
      %v832 = vsel %vm733, %v831, %v830
      %v833 = vperm.slane %v609, %v673
      %v834 = vperm.slane %v611, %v675
      %v835 = vsel %vm677, %v834, %v833
      %v836 = vperm.slane %v613, %v679
      %v837 = vsel %vm681, %v836, %v835
      %v838 = vperm.slane %v615, %v683
      %v839 = vsel %vm685, %v838, %v837
      %v840 = vperm.slane %v617, %v687
      %v841 = vsel %vm689, %v840, %v839
      %v842 = vperm.slane %v619, %v691
      %v843 = vsel %vm693, %v842, %v841
      %v844 = vperm.slane %v621, %v695
      %v845 = vsel %vm697, %v844, %v843
      %v846 = vperm.slane %v623, %v699
      %v847 = vsel %vm701, %v846, %v845
      %v848 = vperm.slane %v625, %v703
      %v849 = vsel %vm705, %v848, %v847
      %v850 = vperm.slane %v627, %v707
      %v851 = vsel %vm709, %v850, %v849
      %v852 = vperm.slane %v629, %v711
      %v853 = vsel %vm713, %v852, %v851
      %v854 = vperm.slane %v631, %v715
      %v855 = vsel %vm717, %v854, %v853
      %v856 = vperm.slane %v633, %v719
      %v857 = vsel %vm721, %v856, %v855
      %v858 = vperm.slane %v635, %v723
      %v859 = vsel %vm725, %v858, %v857
      %v860 = vperm.slane %v637, %v727
      %v861 = vsel %vm729, %v860, %v859
      %v862 = vperm.slane %v639, %v731
      %v863 = vsel %vm733, %v862, %v861
      %v864 = vsel %vm766, %v863, %v832
      %s866 = scalar_lea.vmem [#allocation7], 2
      %867 = vst [vmem:[%s866] sm:$0x3] %v864
    $region17: #{tpu_custom_call.1} parent=1 // pred_fallthru
      _
    // Predicated region
    $region18: #{tpu_custom_call.1} parent=1 // pred_check
      _
    $region19: #{tpu_custom_call.1} parent=1 // pred_check_branch
      %869 = sbr.rel (0) target = $region21
    $region20: #{tpu_custom_call.1} parent=1 // pred_region
      %871 = vsyncadd [#allocation6], 0
      %s872 = sshll.u32 [#allocation7], 4
      %s873 = int_to_ptr.vmem [resolvable:$true] %s872
      %s874 = sshll.u32 %s1, 4
      %s875 = int_to_ptr.hbm [resolvable:$true] %s874
      %880 = dma.vmem_to_hbm [thread:$0]  %s873, 64, %s875, [#allocation6], 32, 32, 2
    $region21: #{tpu_custom_call.1} parent=1 // pred_fallthru
      _
    // Predicated region
    $region22: #{tpu_custom_call.1} parent=1 // pred_check
      _
    $region23: #{tpu_custom_call.1} parent=1 // pred_check_branch
      %882 = sbr.rel (0) target = $region25
    $region24: #{tpu_custom_call.1} parent=1 // pred_region
      %884 = dma.done [#allocation6], 64
    $region25: #{tpu_custom_call.1} parent=1 // pred_fallthru
      _
    %885 = vsyncpa [#allocation5], 1
    %886 = vsyncpa [#allocation6], 1

</llo_original>
